<compile_context>
chip_gen: v7x
topology: tpu7x:2x2x1
jax: 0.10.0
libtpu: 0.0.40
codegen_flags: <defaults>
</compile_context>

<pallas_src>
import functools

import jax
import jax.numpy as jnp
from jax.experimental import pallas as pl
from jax.experimental.pallas import tpu as pltpu


def _fused_mlp_kernel(*refs, num_hidden: int):
    """Fused MLP on one batch tile.

    refs = (x_ref,                                  # (tm, in_sz)  -- untransposed
            wT_0, b_0, ..., wT_{H-1}, b_{H-1},      # hidden: wT:(out,in), b:(out,1)
            w_last, b_last,                         # final Linear(..,1): (last,1),(1,1)
            o_ref)                                  # (1, tm)      -- batch on lanes
    """
    x_ref = refs[0]
    o_ref = refs[-1]
    p = refs[1:-1]

    if num_hidden == 0:
        # Degenerate model: only the final Linear(in_sz, 1).
        h = x_ref[...].T                                   # (in_sz, tm)
    else:
        # Layer 0: contract x's feature axis directly (no wrapper/HBM transpose).
        w0 = p[0][...]                                     # (out0, in_sz)
        b0 = p[1][...]                                     # (out0, 1)
        acc = jax.lax.dot_general(
            w0, x_ref[...], (((1,), (1,)), ((), ())),
            preferred_element_type=jnp.float32) + b0       # (out0, tm)
        h = acc * jax.nn.sigmoid(acc)                      # SiLU, f32

        for li in range(1, num_hidden):
            w = p[2 * li][...]                             # (out, in)
            b = p[2 * li + 1][...]                         # (out, 1)
            acc = jnp.dot(w, h, preferred_element_type=jnp.float32) + b
            h = acc * jax.nn.sigmoid(acc)

    # Final Linear(last, 1): VPU multiply + XLU cross-sublane reduce instead of a
    # degenerate MXU matmul with a width-1 output.
    w_last = p[2 * num_hidden][...]                        # (last, 1)
    b_last = p[2 * num_hidden + 1][...]                    # (1, 1)
    out = jnp.sum(h * w_last, axis=0, keepdims=True) + b_last   # (1, tm)
    o_ref[...] = out.astype(o_ref.dtype)


def _round_up(x: int, m: int) -> int:
    return ((x + m - 1) // m) * m


def fused_mlp_pallas(x, params, *, tm: int = 2048):
    """x: (B, in_sz) f32.  params: list of (w:(in,out), b:(out,)).  Returns (B, 1)."""
    B, in_sz = x.shape
    num_hidden = len(params) - 1

    # Batch-tile selection: big tiles amortize per-step overhead; for B > 128 cap
    # the tile so there are >= 2 tiles (megacore sharding on v7x) while staying
    # 128-lane aligned.  No jnp.pad: ragged last tile handled by Pallas.
    if B <= 128:
        tm_eff = B                       # block dims == full array dims
    else:
        tm_eff = min(tm, max(128, _round_up(pl.cdiv(B, 2), 128)))
    n_tiles = pl.cdiv(B, tm_eff)

    # Operands + specs.  Weights/biases fully VMEM-resident (constant index_map).
    operands = [x]
    in_specs = [pl.BlockSpec((tm_eff, in_sz), lambda i: (i, 0))]
    for li in range(num_hidden):
        w, b = params[li]
        w_t = w.T                        # (out, in)  -- tiny one-time layout op
        b2 = b.reshape(-1, 1)            # (out, 1)
        operands += [w_t, b2]
        in_specs += [
            pl.BlockSpec(w_t.shape, lambda i: (0, 0)),
            pl.BlockSpec(b2.shape, lambda i: (0, 0)),
        ]
    w_last, b_last = params[-1]
    w_last2 = w_last.reshape(-1, 1)      # (last, 1)
    b_last2 = b_last.reshape(1, 1)       # (1, 1)
    operands += [w_last2, b_last2]
    in_specs += [
        pl.BlockSpec(w_last2.shape, lambda i: (0, 0)),
        pl.BlockSpec(b_last2.shape, lambda i: (0, 0)),
    ]

    # Advisory cost estimate (helps XLA overlap surrounding ops).
    itemsize = x.dtype.itemsize
    layer_dims = [(w.shape[0], w.shape[1]) for (w, _) in params]   # (in, out)
    flops = 2 * B * sum(i * o for (i, o) in layer_dims)
    transcendentals = B * sum(o for (_, o) in layer_dims[:-1])     # one exp / SiLU elem
    weight_bytes = sum(w.size * w.dtype.itemsize + b.size * b.dtype.itemsize
                       for (w, b) in params)
    bytes_accessed = B * in_sz * itemsize + weight_bytes + B * itemsize
    cost = pl.CostEstimate(flops=flops, transcendentals=transcendentals,
                           bytes_accessed=bytes_accessed)

    # Raise the VMEM limit only when the actual footprint exceeds the 32 MiB
    # scoped default (never blanket-request v7x's full 64 MiB).
    max_feat = max([in_sz] + [o for (_, o) in layer_dims])
    vmem_need = (2 * tm_eff * in_sz * itemsize        # double-buffered input tile
                 + 2 * weight_bytes                   # double-buffered resident weights
                 + 2 * tm_eff * itemsize              # double-buffered output tile
                 + 2 * max_feat * tm_eff * 4          # live f32 activations
                 + (1 << 20))                         # headroom
    cp_kwargs = dict(dimension_semantics=("parallel",))
    if vmem_need > 32 * 1024 * 1024:
        cp_kwargs["vmem_limit_bytes"] = int(vmem_need)

    kernel = functools.partial(_fused_mlp_kernel, num_hidden=num_hidden)

    out_t = pl.pallas_call(
        kernel,
        out_shape=jax.ShapeDtypeStruct((1, B), x.dtype),
        grid_spec=pltpu.PrefetchScalarGridSpec(
            num_scalar_prefetch=0,
            grid=(n_tiles,),
            in_specs=in_specs,
            out_specs=pl.BlockSpec((1, tm_eff), lambda i: (0, i)),
        ),
        compiler_params=pltpu.CompilerParams(**cp_kwargs),
        cost_estimate=cost,
    )(*operands)

    # (1, B) -> (B, 1)
    return out_t.T


class PredictModelPallas:
    """JAX/Pallas equivalent of PredictModel:
    [Linear(in,out) -> SiLU] for consecutive szs, then Linear(szs[-1], 1)."""

    def __init__(self, szs, key, dtype=jnp.float32):
        self.szs = list(szs)
        self.params = []
        dims = list(zip(self.szs[:-1], self.szs[1:])) + [(self.szs[-1], 1)]
        for (in_sz, out_sz) in dims:
            key, kw, kb = jax.random.split(key, 3)
            bound = 1.0 / (in_sz ** 0.5)   # torch.nn.Linear default init range
            w = jax.random.uniform(kw, (in_sz, out_sz), dtype, -bound, bound)
            b = jax.random.uniform(kb, (out_sz,), dtype, -bound, bound)
            self.params.append((w, b))

    def __call__(self, feature_all, tm: int = 2048):
        return fused_mlp_pallas(feature_all, self.params, tm=tm)


def _reference_forward(model, x):
    """Pure-JAX reference for correctness check."""
    n_layers = len(model.params)
    for li, (w, b) in enumerate(model.params):
        x = x @ w + b
        if li != n_layers - 1:
            x = x * jax.nn.sigmoid(x)
    return x


if __name__ == "__main__":
    key = jax.random.PRNGKey(0)
    k_model, k_in1, k_in2 = jax.random.split(key, 3)

    szs = [32, 64, 32]
    model = PredictModelPallas(szs, k_model)

    # Case 1: tiny batch -> single full-batch tile.
    x1 = jax.random.normal(k_in1, (8, szs[0]), jnp.float32)
    out1 = jax.block_until_ready(model(x1))
    ref1 = _reference_forward(model, x1)
    assert out1.shape == (8, 1), out1.shape
    assert jnp.allclose(out1, ref1, atol=1e-5, rtol=1e-5), "mismatch vs reference (B=8)"

    # Case 2: multi-tile with a ragged last tile (no pad pass; masked OOB stores).
    x2 = jax.random.normal(k_in2, (300, szs[0]), jnp.float32)
    out2 = jax.block_until_ready(model(x2))
    ref2 = _reference_forward(model, x2)
    assert out2.shape == (300, 1), out2.shape
    assert jnp.allclose(out2, ref2, atol=1e-5, rtol=1e-5), "mismatch vs reference (B=300)"

    print("KERNEL_OK")
</pallas_src>

<mosaic_0001>
module attributes {stable_mosaic.version = 11 : i64} {
  func.func @_fused_mlp_kernel(%arg0: i32, %arg1: memref<8x32xf32, #tpu.memory_space<vmem>>, %arg2: memref<64x32xf32, #tpu.memory_space<vmem>>, %arg3: memref<64x1xf32, #tpu.memory_space<vmem>>, %arg4: memref<32x64xf32, #tpu.memory_space<vmem>>, %arg5: memref<32x1xf32, #tpu.memory_space<vmem>>, %arg6: memref<32x1xf32, #tpu.memory_space<vmem>>, %arg7: memref<1x1xf32, #tpu.memory_space<vmem>>, %arg8: memref<1x8xf32, #tpu.memory_space<vmem>>) attributes {dimension_semantics = [#tpu.dimension_semantics<parallel>], iteration_bounds = array<i64: 1>, scalar_prefetch = 0 : i64, scratch_operands = 0 : i64, tpu.core_type = #tpu.core_type<tc>, window_params = [{transform_indices = @transform_0, window_bounds = array<i64: 8, 32>}, {pipeline_mode = #tpu.pipeline_mode<synchronous>, transform_indices = @transform_1, window_bounds = array<i64: 64, 32>}, {pipeline_mode = #tpu.pipeline_mode<synchronous>, transform_indices = @transform_2, window_bounds = array<i64: 64, 1>}, {pipeline_mode = #tpu.pipeline_mode<synchronous>, transform_indices = @transform_3, window_bounds = array<i64: 32, 64>}, {pipeline_mode = #tpu.pipeline_mode<synchronous>, transform_indices = @transform_4, window_bounds = array<i64: 32, 1>}, {pipeline_mode = #tpu.pipeline_mode<synchronous>, transform_indices = @transform_5, window_bounds = array<i64: 32, 1>}, {pipeline_mode = #tpu.pipeline_mode<synchronous>, transform_indices = @transform_6, window_bounds = array<i64: 1, 1>}, {transform_indices = @transform_7, window_bounds = array<i64: 1, 8>}]} {
    %c0 = arith.constant 0 : index
    %c0_0 = arith.constant 0 : index
    %0 = vector.load %arg2[%c0, %c0_0] : memref<64x32xf32, #tpu.memory_space<vmem>>, vector<64x32xf32>
    %c0_1 = arith.constant 0 : index
    %c0_2 = arith.constant 0 : index
    %1 = vector.load %arg3[%c0_1, %c0_2] : memref<64x1xf32, #tpu.memory_space<vmem>>, vector<64x1xf32>
    %c0_3 = arith.constant 0 : index
    %c0_4 = arith.constant 0 : index
    %2 = vector.load %arg1[%c0_3, %c0_4] : memref<8x32xf32, #tpu.memory_space<vmem>>, vector<8x32xf32>
    %cst = arith.constant dense<0.000000e+00> : vector<64x8xf32>
    %3 = tpu.matmul %0, %2, %cst {dimension_numbers = #tpu.dot_dimension_numbers<[1], [1], [0], [0], [0, 0, 1, 0], [], []>} : vector<64x32xf32>, vector<8x32xf32>, vector<64x8xf32> -> vector<64x8xf32>
    %4 = vector.broadcast %1 : vector<64x1xf32> to vector<64x8xf32>
    %5 = arith.addf %3, %4 : vector<64x8xf32>
    %6 = arith.negf %5 : vector<64x8xf32>
    %7 = math.exp %6 : vector<64x8xf32>
    %cst_5 = arith.constant 1.000000e+00 : f32
    %8 = vector.broadcast %cst_5 : f32 to vector<64x8xf32>
    %9 = arith.addf %8, %7 : vector<64x8xf32>
    %10 = arith.divf %8, %9 : vector<64x8xf32>
    %11 = arith.mulf %5, %10 : vector<64x8xf32>
    %c0_6 = arith.constant 0 : index
    %c0_7 = arith.constant 0 : index
    %12 = vector.load %arg4[%c0_6, %c0_7] : memref<32x64xf32, #tpu.memory_space<vmem>>, vector<32x64xf32>
    %c0_8 = arith.constant 0 : index
    %c0_9 = arith.constant 0 : index
    %13 = vector.load %arg5[%c0_8, %c0_9] : memref<32x1xf32, #tpu.memory_space<vmem>>, vector<32x1xf32>
    %cst_10 = arith.constant dense<0.000000e+00> : vector<32x8xf32>
    %14 = tpu.matmul %12, %11, %cst_10 {dimension_numbers = #tpu.dot_dimension_numbers<[1], [0], [0], [1], [0, 0, 1, 1], [], []>} : vector<32x64xf32>, vector<64x8xf32>, vector<32x8xf32> -> vector<32x8xf32>
    %15 = vector.broadcast %13 : vector<32x1xf32> to vector<32x8xf32>
    %16 = arith.addf %14, %15 : vector<32x8xf32>
    %17 = arith.negf %16 : vector<32x8xf32>
    %18 = math.exp %17 : vector<32x8xf32>
    %cst_11 = arith.constant 1.000000e+00 : f32
    %19 = vector.broadcast %cst_11 : f32 to vector<32x8xf32>
    %20 = arith.addf %19, %18 : vector<32x8xf32>
    %21 = arith.divf %19, %20 : vector<32x8xf32>
    %22 = arith.mulf %16, %21 : vector<32x8xf32>
    %c0_12 = arith.constant 0 : index
    %c0_13 = arith.constant 0 : index
    %23 = vector.load %arg6[%c0_12, %c0_13] : memref<32x1xf32, #tpu.memory_space<vmem>>, vector<32x1xf32>
    %c0_14 = arith.constant 0 : index
    %c0_15 = arith.constant 0 : index
    %24 = vector.load %arg7[%c0_14, %c0_15] : memref<1x1xf32, #tpu.memory_space<vmem>>, vector<1x1xf32>
    %25 = vector.broadcast %23 : vector<32x1xf32> to vector<32x8xf32>
    %26 = arith.mulf %22, %25 : vector<32x8xf32>
    %cst_16 = arith.constant dense<0.000000e+00> : vector<8xf32>
    %27 = vector.multi_reduction <add>, %26, %cst_16 [0] : vector<32x8xf32> to vector<8xf32>
    %28 = vector.shape_cast %27 : vector<8xf32> to vector<1x8xf32>
    %29 = vector.broadcast %24 : vector<1x1xf32> to vector<1x8xf32>
    %30 = arith.addf %28, %29 : vector<1x8xf32>
    %c0_17 = arith.constant 0 : index
    %c0_18 = arith.constant 0 : index
    %31 = vector.load %arg8[%c0_17, %c0_18] : memref<1x8xf32, #tpu.memory_space<vmem>>, vector<1x8xf32>
    tpu.vector_store %arg8[%c0_17, %c0_18], %30 {strides = array<i32>} : memref<1x8xf32, #tpu.memory_space<vmem>>, vector<1x8xf32>,
    return
  }
  func.func @transform_0(%arg0: i32) -> (i32, i32) {
    %c0_i32 = arith.constant 0 : i32
    %c0_i32_0 = arith.constant 0 : i32
    return %arg0, %c0_i32 : i32, i32
  }
  func.func @transform_1(%arg0: i32) -> (i32, i32) {
    %c0_i32 = arith.constant 0 : i32
    %c0_i32_0 = arith.constant 0 : i32
    %c0_i32_1 = arith.constant 0 : i32
    return %c0_i32, %c0_i32_0 : i32, i32
  }
  func.func @transform_2(%arg0: i32) -> (i32, i32) {
    %c0_i32 = arith.constant 0 : i32
    %c0_i32_0 = arith.constant 0 : i32
    %c0_i32_1 = arith.constant 0 : i32
    return %c0_i32, %c0_i32_0 : i32, i32
  }
  func.func @transform_3(%arg0: i32) -> (i32, i32) {
    %c0_i32 = arith.constant 0 : i32
    %c0_i32_0 = arith.constant 0 : i32
    %c0_i32_1 = arith.constant 0 : i32
    return %c0_i32, %c0_i32_0 : i32, i32
  }
  func.func @transform_4(%arg0: i32) -> (i32, i32) {
    %c0_i32 = arith.constant 0 : i32
    %c0_i32_0 = arith.constant 0 : i32
    %c0_i32_1 = arith.constant 0 : i32
    return %c0_i32, %c0_i32_0 : i32, i32
  }
  func.func @transform_5(%arg0: i32) -> (i32, i32) {
    %c0_i32 = arith.constant 0 : i32
    %c0_i32_0 = arith.constant 0 : i32
    %c0_i32_1 = arith.constant 0 : i32
    return %c0_i32, %c0_i32_0 : i32, i32
  }
  func.func @transform_6(%arg0: i32) -> (i32, i32) {
    %c0_i32 = arith.constant 0 : i32
    %c0_i32_0 = arith.constant 0 : i32
    %c0_i32_1 = arith.constant 0 : i32
    return %c0_i32, %c0_i32_0 : i32, i32
  }
  func.func @transform_7(%arg0: i32) -> (i32, i32) {
    %c0_i32 = arith.constant 0 : i32
    %c0_i32_0 = arith.constant 0 : i32
    return %c0_i32, %arg0 : i32, i32
  }
}

</mosaic_0001>

<llo_original>
// kernel: tpu_custom_call.1
$region0: #{tpu_custom_call.1}
  #allocation0 [shape = 'u32[]', space=smem, size = 0x4, offset = 0x4, fixed_abs, tag = 'smem constant byte address 0x4 - core index']
  #allocation1 [shape = 'u32[144,128]{1,0:T(1,128)}', space=vmem, size = 0x12000, scoped, tag = 'internal scratch']
  #allocation2 [shape = 'f32[1,1]{1,0:T(1,128)S(1)}', space=vmem, size = 0x200, scoped, tag = 'scoped memory for tpu_custom_call.1']
  %s0 = inlined_call_operand.vmem [shape: f32[8,32], index: 0, kind: input, shape index: {}]
  %s1 = inlined_call_operand.vmem [shape: f32[64,32], index: 1, kind: input, shape index: {}]
  %s2 = inlined_call_operand.vmem [shape: f32[64,1], index: 2, kind: input, shape index: {}]
  %s3 = inlined_call_operand.vmem [shape: f32[32,64], index: 3, kind: input, shape index: {}]
  %s4 = inlined_call_operand.vmem [shape: f32[32,1], index: 4, kind: input, shape index: {}]
  %s5 = inlined_call_operand.vmem [shape: f32[32,1], index: 5, kind: input, shape index: {}]
  %s6 = inlined_call_operand.<no memory space> [shape: f32[1,1], index: 6, kind: input, shape index: {}]
  %s7 = inlined_call_operand.hbm [shape: f32[1,8], index: 7, kind: output, shape index: {}]
  %s8 = sld [smem:[#allocation0]]
  $region38: #{tpu_custom_call.1} parent=0
    _
  %s10 = ssub.s32 1, %s8
  %s11 = scalar_select 0, %s10, %s8
  %v12 = vstv %s6
  %13 = vst [vmem:[#allocation2] sm:$0x1] %v12
  $region1: #{tpu_custom_call.1} parent=0
    #allocation3 [shape = 'u8[512]{0}', space=vmem, size = 0x400, scoped, tag = 'output window, operand 0, single buffered']
    #allocation4 [shape = 's32[1]{0}', space=sflag, size = 0x4, scoped, tag = 'scoped memory for tpu_custom_call.1']
    %14 = vsyncpa [#allocation4], 0
    // Predicated region
    $region2: #{tpu_custom_call.1} parent=1 // pred_check
      _
    $region3: #{tpu_custom_call.1} parent=1 // pred_check_branch
      %16 = sbr.rel (0) target = $region5
    $region4: #{tpu_custom_call.1} parent=1 // pred_region
      _
    $region5: #{tpu_custom_call.1} parent=1 // pred_fallthru
      _
    // Predicated region
    $region6: #{tpu_custom_call.1} parent=1 // pred_check
      _
    $region7: #{tpu_custom_call.1} parent=1 // pred_check_branch
      %18 = sbr.rel (0) target = $region9
    $region8: #{tpu_custom_call.1} parent=1 // pred_region
      _
    $region9: #{tpu_custom_call.1} parent=1 // pred_fallthru
      _
    // Predicated region
    $region10: #{tpu_custom_call.1} parent=1 // pred_check
      _
    $region11: #{tpu_custom_call.1} parent=1 // pred_check_branch
      %20 = sbr.rel (0) target = $region13
    $region12: #{tpu_custom_call.1} parent=1 // pred_region
      _
    $region13: #{tpu_custom_call.1} parent=1 // pred_fallthru
      _
    // Predicated region
    $region14: #{tpu_custom_call.1} parent=1 // pred_check
      _
    $region15: #{tpu_custom_call.1} parent=1 // pred_check_branch
      %22 = sbr.rel (0) target = $region17
    $region16: #{tpu_custom_call.1} parent=1 // pred_region
      _
    $region17: #{tpu_custom_call.1} parent=1 // pred_fallthru
      _
    // Predicated region
    $region18: #{tpu_custom_call.1} parent=1 // pred_check
      _
    $region19: #{tpu_custom_call.1} parent=1 // pred_check_branch
      %24 = sbr.rel (0) target = $region21
    $region20: #{tpu_custom_call.1} parent=1 // pred_region
      _
    $region21: #{tpu_custom_call.1} parent=1 // pred_fallthru
      _
    // Predicated region
    $region22: #{tpu_custom_call.1} parent=1 // pred_check
      _
    $region23: #{tpu_custom_call.1} parent=1 // pred_check_branch
      %26 = sbr.rel (0) target = $region25
    $region24: #{tpu_custom_call.1} parent=1 // pred_region
      _
    $region25: #{tpu_custom_call.1} parent=1 // pred_fallthru
      _
    // Predicated region
    $region26: #{tpu_custom_call.1} parent=1 // pred_check
      _
    $region27: #{tpu_custom_call.1} parent=1 // pred_check_branch
      %28 = sbr.rel (0) target = $region29
    $region28: #{tpu_custom_call.1} parent=1 // pred_region
      _
    $region29: #{tpu_custom_call.1} parent=1 // pred_fallthru
      _
    %v29 = vld [vmem:[%s1] sm:$0xff]
    %v30 = vld [vmem:[%s1 + $0x8] sm:$0xff]
    %v31 = vld [vmem:[%s1 + $0x10] sm:$0xff]
    %v32 = vld [vmem:[%s1 + $0x18] sm:$0xff]
    %v33 = vld [vmem:[%s1 + $0x20] sm:$0xff]
    %v34 = vld [vmem:[%s1 + $0x28] sm:$0xff]
    %v35 = vld [vmem:[%s1 + $0x30] sm:$0xff]
    %v36 = vld [vmem:[%s1 + $0x38] sm:$0xff]
    %v37 = vld [vmem:[%s2] sm:$0xff]
    %v38 = vld [vmem:[%s2 + $0x8] sm:$0xff]
    %v39 = vld [vmem:[%s2 + $0x10] sm:$0xff]
    %v40 = vld [vmem:[%s2 + $0x18] sm:$0xff]
    %v41 = vld [vmem:[%s2 + $0x20] sm:$0xff]
    %v42 = vld [vmem:[%s2 + $0x28] sm:$0xff]
    %v43 = vld [vmem:[%s2 + $0x30] sm:$0xff]
    %v44 = vld [vmem:[%s2 + $0x38] sm:$0xff]
    %v45 = vld [vmem:[%s0] sm:$0xff]
    %47 = vset.pattern.permute.xlu0 0
    %48 = vperm.xlu0 %47, %v37
    %v49 = vpop.permute.xlu0 %48
    %52 = vset.pattern.permute.xlu0 0
    %53 = vperm.xlu0 %52, %v38
    %v54 = vpop.permute.xlu0 %53
    %57 = vset.pattern.permute.xlu0 0
    %58 = vperm.xlu0 %57, %v39
    %v59 = vpop.permute.xlu0 %58
    %62 = vset.pattern.permute.xlu0 0
    %63 = vperm.xlu0 %62, %v40
    %v64 = vpop.permute.xlu0 %63
    %67 = vset.pattern.permute.xlu0 0
    %68 = vperm.xlu0 %67, %v41
    %v69 = vpop.permute.xlu0 %68
    %72 = vset.pattern.permute.xlu0 0
    %73 = vperm.xlu0 %72, %v42
    %v74 = vpop.permute.xlu0 %73
    %77 = vset.pattern.permute.xlu0 0
    %78 = vperm.xlu0 %77, %v43
    %v79 = vpop.permute.xlu0 %78
    %82 = vset.pattern.permute.xlu0 0
    %83 = vperm.xlu0 %82, %v44
    %v84 = vpop.permute.xlu0 %83
    %vm86 = vcmask 261120
    %v88 = vsel %vm86, %v29, 0
    %v91 = vsel %vm86, %v30, 0
    %v94 = vsel %vm86, %v31, 0
    %v97 = vsel %vm86, %v32, 0
    %v100 = vsel %vm86, %v33, 0
    %v103 = vsel %vm86, %v34, 0
    %v106 = vsel %vm86, %v35, 0
    %v109 = vsel %vm86, %v36, 0
    %v112 = vsel %vm86, %v45, 0
    %114 = vmatprep.subr.mxu0 0.0
    %115 = vmatpush1.xpose.msra.mxu0 %v112
    %116 = vmatprep.subr.mxu0 0.0
    %117 = vmatpush1.xpose.msra.mxu0 0.0
    %118 = vmatprep.subr.mxu0 0.0
    %119 = vmatpush1.xpose.msra.mxu0 0.0
    %120 = vmatprep.subr.mxu0 0.0
    %121 = vmatpush1.xpose.msra.mxu0 0.0
    %122 = vmatprep.subr.mxu0 0.0
    %123 = vmatpush1.xpose.msra.mxu0 0.0
    %124 = vmatprep.subr.mxu0 0.0
    %125 = vmatpush1.xpose.msra.mxu0 0.0
    %126 = vmatprep.subr.mxu0 0.0
    %127 = vmatpush1.xpose.msra.mxu0 0.0
    %128 = vmatprep.subr.mxu0 0.0
    %129 = vmatpush1.xpose.msra.mxu0 0.0
    %130 = vmatprep.subr.mxu0 0.0
    %131 = vmatpush1.xpose.msra.mxu0 0.0
    %132 = vmatprep.subr.mxu0 0.0
    %133 = vmatpush1.xpose.msra.mxu0 0.0
    %134 = vmatprep.subr.mxu0 0.0
    %135 = vmatpush1.xpose.msra.mxu0 0.0
    %136 = vmatprep.subr.mxu0 0.0
    %137 = vmatpush1.xpose.msra.mxu0 0.0
    %138 = vmatprep.subr.mxu0 0.0
    %139 = vmatpush1.xpose.msra.mxu0 0.0
    %140 = vmatprep.subr.mxu0 0.0
    %141 = vmatpush1.xpose.msra.mxu0 0.0
    %142 = vmatprep.subr.mxu0 0.0
    %143 = vmatpush1.xpose.msra.mxu0 0.0
    %144 = vmatprep.subr.mxu0 0.0
    %145 = vmatpush1.xpose.msra.mxu0 0.0
    %146 = vmatprep.subr.mxu0 0.0
    %147 = vmatpush1.xpose.msra.mxu0 0.0
    %148 = vmatprep.subr.mxu0 0.0
    %149 = vmatpush1.xpose.msra.mxu0 0.0
    %150 = vmatprep.subr.mxu0 0.0
    %151 = vmatpush1.xpose.msra.mxu0 0.0
    %152 = vmatprep.subr.mxu0 0.0
    %153 = vmatpush1.xpose.msra.mxu0 0.0
    %154 = vmatprep.subr.mxu0 0.0
    %155 = vmatpush1.xpose.msra.mxu0 0.0
    %156 = vmatprep.subr.mxu0 0.0
    %157 = vmatpush1.xpose.msra.mxu0 0.0
    %158 = vmatprep.subr.mxu0 0.0
    %159 = vmatpush1.xpose.msra.mxu0 0.0
    %160 = vmatprep.subr.mxu0 0.0
    %161 = vmatpush1.xpose.msra.mxu0 0.0
    %162 = vmatprep.subr.mxu0 0.0
    %163 = vmatpush1.xpose.msra.mxu0 0.0
    %164 = vmatprep.subr.mxu0 0.0
    %165 = vmatpush1.xpose.msra.mxu0 0.0
    %166 = vmatprep.subr.mxu0 0.0
    %167 = vmatpush1.xpose.msra.mxu0 0.0
    %168 = vmatprep.subr.mxu0 0.0
    %169 = vmatpush1.xpose.msra.mxu0 0.0
    %170 = vmatprep.subr.mxu0 0.0
    %171 = vmatpush1.xpose.msra.mxu0 0.0
    %172 = vmatprep.subr.mxu0 0.0
    %173 = vmatpush1.xpose.msra.mxu0 0.0
    %174 = vmatprep.subr.mxu0 0.0
    %175 = vmatpush1.xpose.msra.mxu0 0.0
    %176 = vmatprep.subr.mxu0 0.0
    %177 = vmatpush1.xpose.msra.mxu0 0.0
    %178 = vmatprep.mubr.f32.mxu0 0.0
    %179 = vmatmul.mubr.f32.gmra.mrb[0].mxu0 %v88
    %v180 = vpop.f32.mrb[0].mxu0
    %v181 = vadd.f32 %v49, %v180
    %v182 = vpop.f32.mrb[0].mxu0
    %183 = vmatprep.mubr.f32.mxu0 0.0
    %184 = vmatmul.mubr.f32.gmra.mrb[0].mxu0 %v91
    %v185 = vpop.f32.mrb[0].mxu0
    %v186 = vadd.f32 %v54, %v185
    %v187 = vpop.f32.mrb[0].mxu0
    %188 = vmatprep.mubr.f32.mxu0 0.0
    %189 = vmatmul.mubr.f32.gmra.mrb[0].mxu0 %v94
    %v190 = vpop.f32.mrb[0].mxu0
    %v191 = vadd.f32 %v59, %v190
    %v192 = vpop.f32.mrb[0].mxu0
    %193 = vmatprep.mubr.f32.mxu0 0.0
    %194 = vmatmul.mubr.f32.gmra.mrb[0].mxu0 %v97
    %v195 = vpop.f32.mrb[0].mxu0
    %v196 = vadd.f32 %v64, %v195
    %v197 = vpop.f32.mrb[0].mxu0
    %198 = vmatprep.mubr.f32.mxu0 0.0
    %199 = vmatmul.mubr.f32.gmra.mrb[0].mxu0 %v100
    %v200 = vpop.f32.mrb[0].mxu0
    %v201 = vadd.f32 %v69, %v200
    %v202 = vpop.f32.mrb[0].mxu0
    %203 = vmatprep.mubr.f32.mxu0 0.0
    %204 = vmatmul.mubr.f32.gmra.mrb[0].mxu0 %v103
    %v205 = vpop.f32.mrb[0].mxu0
    %v206 = vadd.f32 %v74, %v205
    %v207 = vpop.f32.mrb[0].mxu0
    %208 = vmatprep.mubr.f32.mxu0 0.0
    %209 = vmatmul.mubr.f32.gmra.mrb[0].mxu0 %v106
    %v210 = vpop.f32.mrb[0].mxu0
    %v211 = vadd.f32 %v79, %v210
    %v212 = vpop.f32.mrb[0].mxu0
    %213 = vmatprep.mubr.f32.mxu0 0.0
    %214 = vmatmul.mubr.f32.gmra.mrb[0].mxu0 %v109
    %v215 = vpop.f32.mrb[0].mxu0
    %v216 = vadd.f32 %v84, %v215
    %v217 = vpop.f32.mrb[0].mxu0
    %218 = vdwg.mxu0
    %v219 = vxor.u32 %v181, 2147483648
    %v220 = vxor.u32 %v186, 2147483648
    %v221 = vxor.u32 %v191, 2147483648
    %v222 = vxor.u32 %v196, 2147483648
    %v223 = vxor.u32 %v201, 2147483648
    %v224 = vxor.u32 %v206, 2147483648
    %v225 = vxor.u32 %v211, 2147483648
    %v226 = vxor.u32 %v216, 2147483648
    %v227 = vmul.f32 %v219, 1.442695
    %v228 = vpow.pop %v227
    %v229 = vmul.f32 %v220, 1.442695
    %v230 = vpow.pop %v229
    %v231 = vmul.f32 %v221, 1.442695
    %v232 = vpow.pop %v231
    %v233 = vmul.f32 %v222, 1.442695
    %v234 = vpow.pop %v233
    %v235 = vmul.f32 %v223, 1.442695
    %v236 = vpow.pop %v235
    %v237 = vmul.f32 %v224, 1.442695
    %v238 = vpow.pop %v237
    %v239 = vmul.f32 %v225, 1.442695
    %v240 = vpow.pop %v239
    %v241 = vmul.f32 %v226, 1.442695
    %v242 = vpow.pop %v241
    %v243 = vadd.f32 %v228, 1.0
    %v244 = vadd.f32 %v230, 1.0
    %v245 = vadd.f32 %v232, 1.0
    %v246 = vadd.f32 %v234, 1.0
    %v247 = vadd.f32 %v236, 1.0
    %v248 = vadd.f32 %v238, 1.0
    %v249 = vadd.f32 %v240, 1.0
    %v250 = vadd.f32 %v242, 1.0
    %v251 = vrcp.pop %v243
    %v252 = vmul.f32 1.0, %v251
    %v253 = vrcp.pop %v244
    %v254 = vmul.f32 1.0, %v253
    %v255 = vrcp.pop %v245
    %v256 = vmul.f32 1.0, %v255
    %v257 = vrcp.pop %v246
    %v258 = vmul.f32 1.0, %v257
    %v259 = vrcp.pop %v247
    %v260 = vmul.f32 1.0, %v259
    %v261 = vrcp.pop %v248
    %v262 = vmul.f32 1.0, %v261
    %v263 = vrcp.pop %v249
    %v264 = vmul.f32 1.0, %v263
    %v265 = vrcp.pop %v250
    %v266 = vmul.f32 1.0, %v265
    %v267 = vmul.f32 %v181, %v252
    %v268 = vmul.f32 %v186, %v254
    %v269 = vmul.f32 %v191, %v256
    %v270 = vmul.f32 %v196, %v258
    %v271 = vmul.f32 %v201, %v260
    %v272 = vmul.f32 %v206, %v262
    %v273 = vmul.f32 %v211, %v264
    %v274 = vmul.f32 %v216, %v266
    %v275 = vld [vmem:[%s3] sm:$0xff]
    %v276 = vld [vmem:[%s3 + $0x8] sm:$0xff]
    %v277 = vld [vmem:[%s3 + $0x10] sm:$0xff]
    %v278 = vld [vmem:[%s3 + $0x18] sm:$0xff]
    %v279 = vld [vmem:[%s4] sm:$0xff]
    %v280 = vld [vmem:[%s4 + $0x8] sm:$0xff]
    %v281 = vld [vmem:[%s4 + $0x10] sm:$0xff]
    %v282 = vld [vmem:[%s4 + $0x18] sm:$0xff]
    %284 = vset.pattern.permute.xlu0 0
    %285 = vperm.xlu0 %284, %v279
    %v286 = vpop.permute.xlu0 %285
    %289 = vset.pattern.permute.xlu0 0
    %290 = vperm.xlu0 %289, %v280
    %v291 = vpop.permute.xlu0 %290
    %294 = vset.pattern.permute.xlu0 0
    %295 = vperm.xlu0 %294, %v281
    %v296 = vpop.permute.xlu0 %295
    %299 = vset.pattern.permute.xlu0 0
    %300 = vperm.xlu0 %299, %v282
    %v301 = vpop.permute.xlu0 %300
    %vm303 = vcmask 523264
    %v305 = vsel %vm303, %v275, 0
    %v308 = vsel %vm303, %v276, 0
    %v311 = vsel %vm303, %v277, 0
    %v314 = vsel %vm303, %v278, 0
    %316 = vmatprep.subr.mxu0 0.0
    %317 = vmatpush1.msra.mxu0 %v267
    %318 = vmatprep.subr.mxu0 0.0
    %319 = vmatpush1.msra.mxu0 %v268
    %320 = vmatprep.subr.mxu0 0.0
    %321 = vmatpush1.msra.mxu0 %v269
    %322 = vmatprep.subr.mxu0 0.0
    %323 = vmatpush1.msra.mxu0 %v270
    %324 = vmatprep.subr.mxu0 0.0
    %325 = vmatpush1.msra.mxu0 %v271
    %326 = vmatprep.subr.mxu0 0.0
    %327 = vmatpush1.msra.mxu0 %v272
    %328 = vmatprep.subr.mxu0 0.0
    %329 = vmatpush1.msra.mxu0 %v273
    %330 = vmatprep.subr.mxu0 0.0
    %331 = vmatpush1.msra.mxu0 %v274
    %332 = vmatprep.subr.mxu0 0.0
    %333 = vmatpush1.msra.mxu0 0.0
    %334 = vmatprep.subr.mxu0 0.0
    %335 = vmatpush1.msra.mxu0 0.0
    %336 = vmatprep.subr.mxu0 0.0
    %337 = vmatpush1.msra.mxu0 0.0
    %338 = vmatprep.subr.mxu0 0.0
    %339 = vmatpush1.msra.mxu0 0.0
    %340 = vmatprep.subr.mxu0 0.0
    %341 = vmatpush1.msra.mxu0 0.0
    %342 = vmatprep.subr.mxu0 0.0
    %343 = vmatpush1.msra.mxu0 0.0
    %344 = vmatprep.subr.mxu0 0.0
    %345 = vmatpush1.msra.mxu0 0.0
    %346 = vmatprep.subr.mxu0 0.0
    %347 = vmatpush1.msra.mxu0 0.0
    %348 = vmatprep.subr.mxu0 0.0
    %349 = vmatpush1.msra.mxu0 0.0
    %350 = vmatprep.subr.mxu0 0.0
    %351 = vmatpush1.msra.mxu0 0.0
    %352 = vmatprep.subr.mxu0 0.0
    %353 = vmatpush1.msra.mxu0 0.0
    %354 = vmatprep.subr.mxu0 0.0
    %355 = vmatpush1.msra.mxu0 0.0
    %356 = vmatprep.subr.mxu0 0.0
    %357 = vmatpush1.msra.mxu0 0.0
    %358 = vmatprep.subr.mxu0 0.0
    %359 = vmatpush1.msra.mxu0 0.0
    %360 = vmatprep.subr.mxu0 0.0
    %361 = vmatpush1.msra.mxu0 0.0
    %362 = vmatprep.subr.mxu0 0.0
    %363 = vmatpush1.msra.mxu0 0.0
    %364 = vmatprep.subr.mxu0 0.0
    %365 = vmatpush1.msra.mxu0 0.0
    %366 = vmatprep.subr.mxu0 0.0
    %367 = vmatpush1.msra.mxu0 0.0
    %368 = vmatprep.subr.mxu0 0.0
    %369 = vmatpush1.msra.mxu0 0.0
    %370 = vmatprep.subr.mxu0 0.0
    %371 = vmatpush1.msra.mxu0 0.0
    %372 = vmatprep.subr.mxu0 0.0
    %373 = vmatpush1.msra.mxu0 0.0
    %374 = vmatprep.subr.mxu0 0.0
    %375 = vmatpush1.msra.mxu0 0.0
    %376 = vmatprep.subr.mxu0 0.0
    %377 = vmatpush1.msra.mxu0 0.0
    %378 = vmatprep.subr.mxu0 0.0
    %379 = vmatpush1.msra.mxu0 0.0
    %380 = vmatprep.mubr.f32.mxu0 0.0
    %381 = vmatmul.mubr.f32.gmra.mrb[0].mxu0 %v305
    %v382 = vpop.f32.mrb[0].mxu0
    %v383 = vadd.f32 %v286, %v382
    %v384 = vpop.f32.mrb[0].mxu0
    %385 = vmatprep.mubr.f32.mxu0 0.0
    %386 = vmatmul.mubr.f32.gmra.mrb[0].mxu0 %v308
    %v387 = vpop.f32.mrb[0].mxu0
    %v388 = vadd.f32 %v291, %v387
    %v389 = vpop.f32.mrb[0].mxu0
    %390 = vmatprep.mubr.f32.mxu0 0.0
    %391 = vmatmul.mubr.f32.gmra.mrb[0].mxu0 %v311
    %v392 = vpop.f32.mrb[0].mxu0
    %v393 = vadd.f32 %v296, %v392
    %v394 = vpop.f32.mrb[0].mxu0
    %395 = vmatprep.mubr.f32.mxu0 0.0
    %396 = vmatmul.mubr.f32.gmra.mrb[0].mxu0 %v314
    %v397 = vpop.f32.mrb[0].mxu0
    %v398 = vadd.f32 %v301, %v397
    %v399 = vpop.f32.mrb[0].mxu0
    %400 = vdwg.mxu0
    %v401 = vxor.u32 %v383, 2147483648
    %v402 = vxor.u32 %v388, 2147483648
    %v403 = vxor.u32 %v393, 2147483648
    %v404 = vxor.u32 %v398, 2147483648
    %v405 = vmul.f32 %v401, 1.442695
    %v406 = vpow.pop %v405
    %v407 = vmul.f32 %v402, 1.442695
    %v408 = vpow.pop %v407
    %v409 = vmul.f32 %v403, 1.442695
    %v410 = vpow.pop %v409
    %v411 = vmul.f32 %v404, 1.442695
    %v412 = vpow.pop %v411
    %v413 = vadd.f32 %v406, 1.0
    %v414 = vadd.f32 %v408, 1.0
    %v415 = vadd.f32 %v410, 1.0
    %v416 = vadd.f32 %v412, 1.0
    %v417 = vrcp.pop %v413
    %v418 = vmul.f32 1.0, %v417
    %v419 = vrcp.pop %v414
    %v420 = vmul.f32 1.0, %v419
    %v421 = vrcp.pop %v415
    %v422 = vmul.f32 1.0, %v421
    %v423 = vrcp.pop %v416
    %v424 = vmul.f32 1.0, %v423
    %v425 = vmul.f32 %v383, %v418
    %v426 = vmul.f32 %v388, %v420
    %v427 = vmul.f32 %v393, %v422
    %v428 = vmul.f32 %v398, %v424
    %v429 = vld [vmem:[%s5] sm:$0xff]
    %v430 = vld [vmem:[%s5 + $0x8] sm:$0xff]
    %v431 = vld [vmem:[%s5 + $0x10] sm:$0xff]
    %v432 = vld [vmem:[%s5 + $0x18] sm:$0xff]
    %v433 = vld [vmem:[#allocation2] sm:$0x1]
    %435 = vset.pattern.permute.xlu0 0
    %436 = vperm.xlu0 %435, %v429
    %v437 = vpop.permute.xlu0 %436
    %440 = vset.pattern.permute.xlu0 0
    %441 = vperm.xlu0 %440, %v430
    %v442 = vpop.permute.xlu0 %441
    %445 = vset.pattern.permute.xlu0 0
    %446 = vperm.xlu0 %445, %v431
    %v447 = vpop.permute.xlu0 %446
    %450 = vset.pattern.permute.xlu0 0
    %451 = vperm.xlu0 %450, %v432
    %v452 = vpop.permute.xlu0 %451
    %v454 = vmul.f32 %v425, %v437
    %v455 = vmul.f32 %v426, %v442
    %v456 = vmul.f32 %v427, %v447
    %v457 = vmul.f32 %v428, %v452
    %vm458 = vcmask 64512
    %v459 = vsel %vm458, %v454, 0.0
    %v460 = vsel %vm458, %v455, 0.0
    %v461 = vadd.f32 %v459, %v460
    %v462 = vsel %vm458, %v456, 0.0
    %v463 = vadd.f32 %v461, %v462
    %v464 = vsel %vm458, %v457, 0.0
    %v465 = vadd.f32 %v463, %v464
    %v466 = vrot.slane %v465, 4
    %v467 = vadd.f32 %v465, %v466
    %v468 = vrot.slane %v467, 2
    %v469 = vadd.f32 %v467, %v468
    %v470 = vrot.slane %v469, 1
    %v471 = vadd.f32 %v469, %v470
    %473 = vset.pattern.permute.xlu0 0
    %474 = vperm.xlu0 %473, %v433
    %v475 = vpop.permute.xlu0 %474
    %v477 = vlaneseq
    %v478 = vshrl.u32 %v477, 7
    %v479 = vsub.s32 0, %v478
    %v480 = vrot.slane %v475, %v479
    %v481 = vadd.f32 %v471, %v480
    %vm482 = vcmask 57344
    %483 = vst.msk [vmem:[#allocation3] sm:$0x1] %vm482, %v481
    // Predicated region
    $region30: #{tpu_custom_call.1} parent=1 // pred_check
      _
    $region31: #{tpu_custom_call.1} parent=1 // pred_check_branch
      %485 = sbr.rel (0) target = $region33
    $region32: #{tpu_custom_call.1} parent=1 // pred_region
      %s487 = ssub.s32 16, 16
      %488 = vsyncadd [#allocation4], %s487
      %s490 = sshll.u32 [#allocation3], 4
      %s491 = int_to_ptr.vmem [resolvable:$true] %s490
      %493 = dma.vmem_to_hbm [thread:$0]  %s491, 16, %s7, [#allocation4]
    $region33: #{tpu_custom_call.1} parent=1 // pred_fallthru
      _
    // Predicated region
    $region34: #{tpu_custom_call.1} parent=1 // pred_check
      _
    $region35: #{tpu_custom_call.1} parent=1 // pred_check_branch
      %495 = sbr.rel (0) target = $region37
    $region36: #{tpu_custom_call.1} parent=1 // pred_region
      %496 = dma.done [#allocation4], 16
    $region37: #{tpu_custom_call.1} parent=1 // pred_fallthru
      _
    %497 = vsyncpa [#allocation4], 1

</llo_original>
